<compile_context>
chip_gen: v7x
topology: tpu7x:2x2x1
jax: 0.10.0
libtpu: 0.0.40
codegen_flags: <defaults>
</compile_context>

<pallas_src>
import math

import jax
import jax.numpy as jnp
from jax.experimental import pallas as pl
from jax.experimental.pallas import tpu as pltpu


# ----------------------------- reference grid ------------------------------ #

def compute_grid(image_size, dtype=jnp.float32):
    """JAX port of GReAT4Torch utils.compute_grid for dim == 2.

    Identity sampling grid with coordinates in [-1, 1] (align_corners=True),
    returned as (1, dim, H, W). Channel 0 = x (varies along W), channel 1 = y
    (varies along H).
    """
    dim = len(image_size) - 2
    # TODO(synk): 3-D (dim == 3) identity-grid generation; the Pallas kernel below
    # is dim-agnostic, only this helper is 2-D.
    assert dim == 2, "only the 2-D case is implemented here"
    H, W = int(image_size[2]), int(image_size[3])
    y = jnp.linspace(-1.0, 1.0, H, dtype=dtype)
    x = jnp.linspace(-1.0, 1.0, W, dtype=dtype)
    yy, xx = jnp.meshgrid(y, x, indexing="ij")
    return jnp.stack([xx, yy], axis=0)[None]  # (1, 2, H, W)


# ------------------------------ Pallas kernel ------------------------------ #

_LANE = 128
_TARGET_BLOCK_BYTES = 6 << 20      # ~6 MiB per data block; 2xin + 2xout + 2xref
                                   # double-buffered ~ 27 MiB, safe on v5e/v6e/v7x
_SMALL_PROBLEM_BYTES = 1 << 20     # below this, plain fused jnp beats any kernel
_VMEM_LIMIT_BYTES = 40 * 1024 * 1024


def _displacement_kernel(g_ref, r_ref, o_ref):
    """out = grid_block - broadcast(reference_block), one dense full-tile subtract.

    g_ref/o_ref: (TM, TN) block of the flattened (num_images*dim, H*W) slab.
    r_ref:       (dim, TN) block of the flattened (dim, H*W) reference grid.
    TM is a multiple of dim and every row block starts at channel 0, so the
    reference broadcast is a simple sublane tiling of the (dim, TN) block.
    """
    tm = g_ref.shape[0]
    d = r_ref.shape[0]
    reps = tm // d
    r = r_ref[...]                            # (d, TN), loaded once per block
    if reps > 1:
        r = jnp.concatenate([r] * reps, axis=0)   # (TM, TN), once per block, VPU-cheap
    o_ref[...] = g_ref[...] - r               # single unmasked full-tile store


def _native_sublane(dtype):
    """Sublanes per vreg for this dtype: 8 (f32), 16 (bf16/f16), 32 (int8/fp8)."""
    return max(8, 32 // jnp.dtype(dtype).itemsize)


def _choose_tiles(rows, hw, dim, dtype, target_block_bytes):
    """Pick (TM, TN): TM = lcm(native_sublane, dim) (or full rows), TN lane-dense,
    preferring a TN that divides hw so the last column block is not ragged."""
    itemsize = jnp.dtype(dtype).itemsize
    sub = _native_sublane(dtype)
    base = (sub * dim) // math.gcd(sub, dim)         # e.g. 8 for f32/dim2, 16 for bf16/dim2
    tm = rows if rows < base else base               # full extent is legal when rows < base
    max_tn = max(_LANE, (target_block_bytes // (tm * itemsize)) // _LANE * _LANE)
    if hw <= max_tn:
        return tm, hw
    # Prefer a lane-multiple TN that divides hw (no masked tail on the final sweep).
    t = max_tn
    while t >= _LANE:
        if hw % t == 0:
            return tm, t
        t -= _LANE
    return tm, max_tn                                # fallback: ragged tail, write-masked


def principal_affine_forward(grid, reference_grid, *, force_pallas=False,
                             target_block_bytes=_TARGET_BLOCK_BYTES):
    """grid: (num_images, dim, H, W), reference_grid: (1, dim, H, W)."""
    num_images, dim, H, W = grid.shape
    hw = H * W
    rows = num_images * dim
    itemsize = jnp.dtype(grid.dtype).itemsize

    # Small-problem fast path: launch + per-step overhead would dominate; XLA's
    # fused broadcast-subtract is optimal here on all TPU generations.
    if not force_pallas and rows * hw * itemsize < _SMALL_PROBLEM_BYTES:
        return grid - reference_grid

    g2 = grid.reshape(rows, hw)                     # (K*dim, H*W)  lane-dense slab
    r2 = reference_grid.reshape(dim, hw)            # (dim,  H*W)   small, stays resident

    tm, tn = _choose_tiles(rows, hw, dim, grid.dtype, target_block_bytes)
    assert tm % dim == 0
    n_row = pl.cdiv(rows, tm)
    n_col = pl.cdiv(hw, tn)

    cost = pl.CostEstimate(
        flops=rows * hw,                                      # one subtract / element
        transcendentals=0,
        bytes_accessed=(rows * hw + dim * hw + rows * hw) * itemsize,
    )

    out = pl.pallas_call(
        _displacement_kernel,
        out_shape=jax.ShapeDtypeStruct((rows, hw), grid.dtype),
        # cols outer / rows inner: the reference block index (0, j) is unchanged
        # across consecutive row steps, so its DMA is elided by the pipeline.
        grid=(n_col, n_row),
        in_specs=[
            pl.BlockSpec((tm, tn), lambda j, i: (i, j)),     # per-image grids
            pl.BlockSpec((dim, tn), lambda j, i: (0, j)),    # reference grid (small)
        ],
        out_specs=pl.BlockSpec((tm, tn), lambda j, i: (i, j)),
        compiler_params=pltpu.CompilerParams(
            # cols parallel (v7x megacore sharding), rows arbitrary so each TC walks
            # row blocks sequentially within a column -> reference DMA elision holds.
            dimension_semantics=("parallel", "arbitrary"),
            vmem_limit_bytes=_VMEM_LIMIT_BYTES,
        ),
        cost_estimate=cost,
    )(g2, r2)

    return out.reshape(num_images, dim, H, W)


# ------------------------------ module mirror ------------------------------ #

class PrincipalAffineTransformation:
    """JAX mirror of the PyTorch module (2-D case)."""

    def __init__(self, image_size, number_of_images, dtype=jnp.float32):
        self._dtype = dtype
        self._dim = len(image_size) - 2
        self._num_images = number_of_images
        self._image_size = image_size
        self._affine_params = None
        self._reference_grid = compute_grid(image_size, dtype)
        self._grid = self._initialize_grid(image_size)

    def _initialize_grid(self, image_size):
        # The PyTorch module stores a single identity grid; forward() indexes it
        # per image (grid[k]), which only works once a per-image grid has been set
        # via set_grid. We replicate the identity grid num_images times so the
        # default forward is well defined.
        g = compute_grid(image_size, self._dtype)  # (1, dim, H, W)
        return jnp.tile(g, (self._num_images, 1, 1, 1))

    def set_grid(self, grid):
        self._grid = grid

    def get_grid(self):
        return self._grid

    def set_affine_parameters(self, affine_params):
        self._affine_params = affine_params

    def get_affine_parameters(self):
        return self._affine_params

    def forward(self, force_pallas=False):
        # displacement[k] = grid[k].squeeze() - reference_grid.squeeze(), stacked.
        return principal_affine_forward(
            self._grid, self._reference_grid, force_pallas=force_pallas
        )

    __call__ = forward


# ----------------------------------- demo ---------------------------------- #

if __name__ == "__main__":
    key = jax.random.PRNGKey(0)
    num_images, C, H, W = 4, 1, 16, 32        # rows = num_images*dim = 8 -> dense tiles
    image_size = (num_images, C, H, W)

    model = PrincipalAffineTransformation(image_size, num_images)

    # Simulate the registration driver setting per-image affinely warped grids
    # (deterministic "parameters"). This is glue in plain JAX; the module's
    # forward hot path is the broadcast subtraction done in the Pallas kernel.
    k1, k2, k3 = jax.random.split(key, 3)
    A = jnp.eye(2, dtype=jnp.float32)[None] + 0.05 * jax.random.normal(
        k1, (num_images, 2, 2), dtype=jnp.float32
    )
    b = 0.1 * jax.random.normal(k2, (num_images, 2, 1), dtype=jnp.float32)
    model.set_affine_parameters((A, b))

    ref_flat = model._reference_grid.reshape(2, H * W)          # (2, H*W)
    warped = jnp.einsum("kij,jp->kip", A, ref_flat) + b         # (K, 2, H*W)
    model.set_grid(warped.reshape(num_images, 2, H, W).astype(jnp.float32))

    expected = model.get_grid() - model._reference_grid         # plain-JAX reference

    # 1) Pallas kernel path (forced: this demo problem is below the small cutoff).
    disp = principal_affine_forward(
        model.get_grid(), model._reference_grid, force_pallas=True
    )
    disp = jax.block_until_ready(disp)
    assert disp.shape == (num_images, 2, H, W), disp.shape
    assert disp.dtype == jnp.float32
    assert jnp.allclose(disp, expected, atol=1e-6)

    # 2) Auto dispatch: tiny problem -> fused jnp fast path, must agree.
    disp_auto = jax.block_until_ready(model())
    assert jnp.allclose(disp_auto, expected, atol=1e-6)

    # 3) Kernel edge case: num_images*dim < sublane base -> full-extent row block.
    g_small = model.get_grid()[:2]
    disp_small = jax.block_until_ready(
        principal_affine_forward(g_small, model._reference_grid, force_pallas=True)
    )
    assert jnp.allclose(disp_small, g_small - model._reference_grid, atol=1e-6)

    # 4) Ragged-column edge case: hw = 16*33 = 528 with a tiny block budget forces
    #    tn = 128 (no divisor) -> masked tail column block; must still match.
    Hr, Wr = 16, 33
    ref_r = compute_grid((num_images, 1, Hr, Wr))
    g_r = ref_r + 0.01 * jax.random.normal(
        k3, (num_images, 2, Hr, Wr), dtype=jnp.float32
    )
    disp_r = jax.block_until_ready(
        principal_affine_forward(
            g_r, ref_r, force_pallas=True, target_block_bytes=8 * 4 * 128
        )
    )
    assert jnp.allclose(disp_r, g_r - ref_r, atol=1e-6)

    # 5) Dtype-aware tiling: bf16 slab with rows = 16 = native sublane base.
    nb = 8                                                     # rows = 16
    ref_b = compute_grid((nb, 1, H, W), dtype=jnp.bfloat16)
    g_b = (ref_b + 0.01).astype(jnp.bfloat16) * jnp.ones(
        (nb, 2, H, W), dtype=jnp.bfloat16
    )
    disp_b = jax.block_until_ready(
        principal_affine_forward(g_b, ref_b, force_pallas=True)
    )
    assert disp_b.dtype == jnp.bfloat16
    assert jnp.allclose(
        disp_b.astype(jnp.float32), (g_b - ref_b).astype(jnp.float32), atol=1e-6
    )

    print("KERNEL_OK")
</pallas_src>

<mosaic_0001>
module attributes {stable_mosaic.version = 11 : i64} {
  func.func @_displacement_kernel(%arg0: i32, %arg1: i32, %arg2: memref<8x512xf32, #tpu.memory_space<vmem>>, %arg3: memref<2x512xf32, #tpu.memory_space<vmem>>, %arg4: memref<8x512xf32, #tpu.memory_space<vmem>>) attributes {dimension_semantics = [#tpu.dimension_semantics<parallel>, #tpu.dimension_semantics<arbitrary>], iteration_bounds = array<i64: 1, 1>, scalar_prefetch = 0 : i64, scratch_operands = 0 : i64, tpu.core_type = #tpu.core_type<tc>, window_params = [{transform_indices = @transform_0, window_bounds = array<i64: 8, 512>}, {transform_indices = @transform_1, window_bounds = array<i64: 2, 512>}, {transform_indices = @transform_2, window_bounds = array<i64: 8, 512>}]} {
    %c0 = arith.constant 0 : index
    %c0_0 = arith.constant 0 : index
    %0 = vector.load %arg3[%c0, %c0_0] : memref<2x512xf32, #tpu.memory_space<vmem>>, vector<2x512xf32>
    %1 = tpu.concatenate %0, %0, %0, %0 in 0 : vector<2x512xf32>, vector<2x512xf32>, vector<2x512xf32>, vector<2x512xf32> -> vector<8x512xf32>
    %c0_1 = arith.constant 0 : index
    %c0_2 = arith.constant 0 : index
    %2 = vector.load %arg2[%c0_1, %c0_2] : memref<8x512xf32, #tpu.memory_space<vmem>>, vector<8x512xf32>
    %3 = arith.subf %2, %1 : vector<8x512xf32>
    %c0_3 = arith.constant 0 : index
    %c0_4 = arith.constant 0 : index
    %4 = vector.load %arg4[%c0_3, %c0_4] : memref<8x512xf32, #tpu.memory_space<vmem>>, vector<8x512xf32>
    tpu.vector_store %arg4[%c0_3, %c0_4], %3 {strides = array<i32>} : memref<8x512xf32, #tpu.memory_space<vmem>>, vector<8x512xf32>,
    return
  }
  func.func @transform_0(%arg0: i32, %arg1: i32) -> (i32, i32) {
    %c0_i32 = arith.constant 0 : i32
    return %arg1, %arg0 : i32, i32
  }
  func.func @transform_1(%arg0: i32, %arg1: i32) -> (i32, i32) {
    %c0_i32 = arith.constant 0 : i32
    %c0_i32_0 = arith.constant 0 : i32
    return %c0_i32, %arg0 : i32, i32
  }
  func.func @transform_2(%arg0: i32, %arg1: i32) -> (i32, i32) {
    %c0_i32 = arith.constant 0 : i32
    return %arg1, %arg0 : i32, i32
  }
}

</mosaic_0001>

<llo_original>
// kernel: tpu_custom_call.1
$region0: #{tpu_custom_call.1}
  #allocation0 [shape = 'u32[]', space=smem, size = 0x4, offset = 0x4, fixed_abs, tag = 'smem constant byte address 0x4 - core index']
  #allocation1 [shape = 'u32[144,128]{1,0:T(1,128)}', space=vmem, size = 0x12000, scoped, tag = 'internal scratch']
  %s0 = inlined_call_operand.hbm [shape: f32[8,512], index: 0, kind: input, shape index: {}]
  %s1 = inlined_call_operand.hbm [shape: f32[2,512], index: 1, kind: input, shape index: {}]
  %s2 = inlined_call_operand.hbm [shape: f32[8,512], index: 2, kind: output, shape index: {}]
  %s3 = sld [smem:[#allocation0]]
  $region26: #{tpu_custom_call.1} parent=0
    _
  %s5 = ssub.s32 1, %s3
  %s6 = scalar_select 0, %s5, %s3
  $region1: #{tpu_custom_call.1} parent=0
    #allocation2 [shape = 'u8[16384]{0}', space=vmem, size = 0x4000, scoped, tag = 'input window, operand 0, single buffered']
    #allocation3 [shape = 's32[1]{0}', space=sflag, size = 0x4, scoped, tag = 'scoped memory for tpu_custom_call.1']
    #allocation4 [shape = 's32[1]{0}', space=sflag, size = 0x4, scoped, tag = 'scoped memory for tpu_custom_call.1']
    #allocation5 [shape = 'u8[4096]{0}', space=vmem, size = 0x1000, scoped, tag = 'input window, operand 1, single buffered']
    #allocation6 [shape = 's32[1]{0}', space=sflag, size = 0x4, scoped, tag = 'scoped memory for tpu_custom_call.1']
    #allocation7 [shape = 'u8[16384]{0}', space=vmem, size = 0x4000, scoped, tag = 'output window, operand 0, single buffered']
    %7 = vsyncpa [#allocation3], 0
    %8 = vsyncpa [#allocation6], 0
    %9 = vsyncpa [#allocation4], 0
    // Predicated region
    $region2: #{tpu_custom_call.1} parent=1 // pred_check
      _
    $region3: #{tpu_custom_call.1} parent=1 // pred_check_branch
      %11 = sbr.rel (0) target = $region5
    $region4: #{tpu_custom_call.1} parent=1 // pred_region
      %s13 = ssub.s32 512, 512
      %14 = vsyncadd [#allocation3], %s13
      %s16 = sshll.u32 [#allocation2], 4
      %s17 = int_to_ptr.vmem [resolvable:$true] %s16
      %19 = dma.hbm_to_vmem [thread:$0]  %s0, 512, %s17, [#allocation3]
    $region5: #{tpu_custom_call.1} parent=1 // pred_fallthru
      _
    // Predicated region
    $region6: #{tpu_custom_call.1} parent=1 // pred_check
      _
    $region7: #{tpu_custom_call.1} parent=1 // pred_check_branch
      %21 = sbr.rel (0) target = $region9
    $region8: #{tpu_custom_call.1} parent=1 // pred_region
      %s23 = ssub.s32 128, 128
      %24 = vsyncadd [#allocation6], %s23
      %s26 = sshll.u32 [#allocation5], 4
      %s27 = int_to_ptr.vmem [resolvable:$true] %s26
      %29 = dma.hbm_to_vmem [thread:$0]  %s1, 128, %s27, [#allocation6]
    $region9: #{tpu_custom_call.1} parent=1 // pred_fallthru
      _
    // Predicated region
    $region10: #{tpu_custom_call.1} parent=1 // pred_check
      _
    $region11: #{tpu_custom_call.1} parent=1 // pred_check_branch
      %31 = sbr.rel (0) target = $region13
    $region12: #{tpu_custom_call.1} parent=1 // pred_region
      %32 = dma.done [#allocation3], 512
    $region13: #{tpu_custom_call.1} parent=1 // pred_fallthru
      _
    // Predicated region
    $region14: #{tpu_custom_call.1} parent=1 // pred_check
      _
    $region15: #{tpu_custom_call.1} parent=1 // pred_check_branch
      %34 = sbr.rel (0) target = $region17
    $region16: #{tpu_custom_call.1} parent=1 // pred_region
      %35 = dma.done [#allocation6], 128
    $region17: #{tpu_custom_call.1} parent=1 // pred_fallthru
      _
    %v36 = vld [vmem:[#allocation5] sm:$0xff]
    %v38 = vcombine.high %v36, %v36
    %v40 = vunpack.c.l.s4 1983009808
    %v41 = vunpack.c.0.s8 %v40
    %v42 = vlaneseq
    %v43 = vshrl.u32 %v42, 7
    %v44 = vsub.s32 %v41, %v43
    %v45 = vrot.slane %v36, %v44
    %v47 = vunpack.c.l.s4 1983009808
    %v48 = vunpack.c.0.s8 %v47
    %v49 = vlaneseq
    %v50 = vshrl.u32 %v49, 7
    %v51 = vsub.s32 %v48, %v50
    %v52 = vrot.slane %v38, %v51
    %v53 = vcombine.high %v45, %v45
    %v54 = vcombine.high %v52, %v52
    %v59 = vcombine.low %v36, %v36
    %v61 = vunpack.c.l.s4 1983009808
    %v62 = vunpack.c.0.s8 %v61
    %v63 = vlaneseq
    %v64 = vshrl.u32 %v63, 7
    %v65 = vsub.s32 %v62, %v64
    %v66 = vrot.slane %v59, %v65
    %v67 = vcombine.high %v66, %v66
    %v70 = vcombine.low %v45, %v45
    %v71 = vcombine.low %v52, %v52
    %v74 = vcombine.low %v66, %v66
    %vm76 = vcmask 1041408
    %v77 = vsel %vm76, %v45, %v66
    %v78 = vsel %vm76, %v53, %v67
    %v79 = vsel %vm76, %v52, %v45
    %v80 = vsel %vm76, %v54, %v53
    %vm81 = vcmask 1043456
    %v82 = vsel %vm81, %v77, %v70
    %v83 = vsel %vm81, %v78, %v45
    %v84 = vsel %vm81, %v79, %v71
    %v85 = vsel %vm81, %v80, %v52
    %vm86 = vcmask 1045504
    %v87 = vsel %vm86, %v82, %v74
    %v88 = vsel %vm86, %v83, %v66
    %v89 = vsel %vm86, %v84, %v70
    %v90 = vsel %vm86, %v85, %v45
    %v91 = vld [vmem:[#allocation2] sm:$0xff]
    %v92 = vld [vmem:[#allocation2 + $0x8] sm:$0xff]
    %v93 = vld [vmem:[#allocation2 + $0x10] sm:$0xff]
    %v94 = vld [vmem:[#allocation2 + $0x18] sm:$0xff]
    %v95 = vsub.f32 %v91, %v87
    %v96 = vsub.f32 %v92, %v88
    %v97 = vsub.f32 %v93, %v89
    %v98 = vsub.f32 %v94, %v90
    %99 = vst [vmem:[#allocation7] sm:$0xff] %v95
    %100 = vst [vmem:[#allocation7 + $0x8] sm:$0xff] %v96
    %101 = vst [vmem:[#allocation7 + $0x10] sm:$0xff] %v97
    %102 = vst [vmem:[#allocation7 + $0x18] sm:$0xff] %v98
    // Predicated region
    $region18: #{tpu_custom_call.1} parent=1 // pred_check
      _
    $region19: #{tpu_custom_call.1} parent=1 // pred_check_branch
      %104 = sbr.rel (0) target = $region21
    $region20: #{tpu_custom_call.1} parent=1 // pred_region
      %s106 = ssub.s32 512, 512
      %107 = vsyncadd [#allocation4], %s106
      %s109 = sshll.u32 [#allocation7], 4
      %s110 = int_to_ptr.vmem [resolvable:$true] %s109
      %112 = dma.vmem_to_hbm [thread:$0]  %s110, 512, %s2, [#allocation4]
    $region21: #{tpu_custom_call.1} parent=1 // pred_fallthru
      _
    // Predicated region
    $region22: #{tpu_custom_call.1} parent=1 // pred_check
      _
    $region23: #{tpu_custom_call.1} parent=1 // pred_check_branch
      %114 = sbr.rel (0) target = $region25
    $region24: #{tpu_custom_call.1} parent=1 // pred_region
      %115 = dma.done [#allocation4], 512
    $region25: #{tpu_custom_call.1} parent=1 // pred_fallthru
      _
    %116 = vsyncpa [#allocation3], 1
    %117 = vsyncpa [#allocation6], 1
    %118 = vsyncpa [#allocation4], 1

</llo_original>
